<compile_context>
chip_gen: v7x
topology: tpu7x:2x2x1
jax: 0.10.0
libtpu: 0.0.40
codegen_flags: <defaults>
</compile_context>

<pallas_src>
import functools

import jax
import jax.numpy as jnp
from jax.experimental import pallas as pl
from jax.experimental.pallas import tpu as pltpu


def _harmonic_energy_partial_kernel(labels_ref, logits_ref, logits_ft_ref,
                                    out_ref, *, T, n_total, tile_n):
    """One batch tile -> per-tile partial sums in an (8, 128) output block.

    Row 0 of the block holds sum(lse - picked) over valid rows of this tile,
    row 1 holds sum(loss_energy); remaining rows are zero.
    """
    pid = pl.program_id(0)

    logits = logits_ref[...].astype(jnp.float32)         # (tile_n, C)
    logits_ft = logits_ft_ref[...].astype(jnp.float32)   # (tile_n, C)
    labels = labels_ref[...]                              # (tile_n, 1) int32

    tn, c = logits.shape

    # Mask rows that are padding (global row index >= n_total).
    row = pid * tile_n + jax.lax.broadcasted_iota(jnp.int32, (tn, 1), 0)
    valid = (row < n_total).astype(jnp.float32)            # (tile_n, 1)

    # ---- shared-max logsumexp over the class (lane) axis ----
    m_i = jnp.max(logits, axis=-1, keepdims=True)          # (tile_n, 1)
    s_i = jnp.sum(jnp.exp(logits - m_i), axis=-1, keepdims=True)
    lse_i = m_i + jnp.log(s_i)                              # logsumexp(logits)

    m_o = jnp.max(logits_ft, axis=-1, keepdims=True)

    if T == 1.0:
        # energyScore(x, 1) = -logsumexp(x): reuse the CE logsumexp and do a
        # single exp pass per input (cuts EUP exp traffic by ~1/3).
        e_i = -lse_i
        s_o = jnp.sum(jnp.exp(logits_ft - m_o), axis=-1, keepdims=True)
        e_o = -(m_o + jnp.log(s_o))
    else:
        # logsumexp(x / T) = m / T + log(sum(exp((x - m) / T))) for T > 0,
        # so the row max is computed once and shared (no second max pass).
        inv_T = 1.0 / T
        s_it = jnp.sum(jnp.exp((logits - m_i) * inv_T), axis=-1, keepdims=True)
        e_i = -(m_i + T * jnp.log(s_it))
        s_ot = jnp.sum(jnp.exp((logits_ft - m_o) * inv_T), axis=-1, keepdims=True)
        e_o = -(m_o + T * jnp.log(s_ot))

    # ---- cross-entropy numerator: logsumexp - picked logit (one-hot pick) ----
    cls = jax.lax.broadcasted_iota(jnp.int32, (tn, c), 1)
    onehot = (cls == labels).astype(jnp.float32)
    picked = jnp.sum(logits * onehot, axis=-1, keepdims=True)
    ce_sum = jnp.sum((lse_i - picked) * valid)

    # ---- harmonic energy term (exact divide to match reference near poles) ----
    loss_energy = -(2.0 * e_o) / (1.0 + e_o * e_i)
    en_sum = jnp.sum(loss_energy * valid)

    ridx = jax.lax.broadcasted_iota(jnp.int32, (8, 128), 0)
    out_ref[...] = jnp.where(ridx == 0, ce_sum,
                             jnp.where(ridx == 1, en_sum, jnp.float32(0.0)))


def _choose_tile_n(n, c, tile_n=None, target_tile_bytes=2 * 1024 * 1024):
    """Pick a batch tile: multiple of 8, ~2 MiB per f32 input tile, <= padded N."""
    n_pad8 = ((n + 7) // 8) * 8
    if tile_n is None:
        tile_n = target_tile_bytes // max(1, 4 * c)
        tile_n = min(1024, tile_n)
    tile_n = max(8, (int(tile_n) // 8) * 8)
    return min(tile_n, n_pad8)


def harmonic_energy_loss(logits, labels, logits_ft, *, T=1.0, alpha=0.1,
                         tile_n=None):
    n, c = logits.shape
    tile_n = _choose_tile_n(n, c, tile_n)
    num_tiles = -(-n // tile_n)          # ceil
    n_pad = num_tiles * tile_n
    pad = n_pad - n

    logits_p = logits.astype(jnp.float32)
    logits_ft_p = logits_ft.astype(jnp.float32)
    labels_p = labels.astype(jnp.int32).reshape(n, 1)
    if pad:
        # Zero-pad so padded rows stay finite; they are masked in-kernel.
        logits_p = jnp.pad(logits_p, ((0, pad), (0, 0)))
        logits_ft_p = jnp.pad(logits_ft_p, ((0, pad), (0, 0)))
        labels_p = jnp.pad(labels_p, ((0, pad), (0, 0)))

    kernel = functools.partial(_harmonic_energy_partial_kernel,
                               T=float(T), n_total=n, tile_n=tile_n)

    partials = pl.pallas_call(
        kernel,
        out_shape=jax.ShapeDtypeStruct((num_tiles * 8, 128), jnp.float32),
        grid_spec=pltpu.PrefetchScalarGridSpec(
            num_scalar_prefetch=0,
            grid=(num_tiles,),
            in_specs=[
                pl.BlockSpec((tile_n, 1), lambda i: (i, 0)),   # labels
                pl.BlockSpec((tile_n, c), lambda i: (i, 0)),   # logits
                pl.BlockSpec((tile_n, c), lambda i: (i, 0)),   # logits_ft
            ],
            out_specs=pl.BlockSpec((8, 128), lambda i: (i, 0)),
        ),
        compiler_params=pltpu.CompilerParams(
            dimension_semantics=("parallel",),
            vmem_limit_bytes=32 * 1024 * 1024),
    )(labels_p, logits_p, logits_ft_p)

    partials = partials.reshape(num_tiles, 8, 128)
    ce_total = jnp.sum(partials[:, 0, 0])
    en_total = jnp.sum(partials[:, 1, 0])
    inv_n = jnp.float32(1.0 / n)
    return ce_total * inv_n + jnp.float32(alpha) * (en_total * inv_n)


def _reference_loss(logits, labels, logits_ft, T, alpha):
    # Pure-JAX reference for correctness check.
    lse = jax.nn.logsumexp(logits, axis=1)
    picked = jnp.take_along_axis(logits, labels[:, None], axis=1)[:, 0]
    loss_discr = jnp.mean(lse - picked)
    e_i = -T * jax.nn.logsumexp(logits / T, axis=1)
    e_o = -T * jax.nn.logsumexp(logits_ft / T, axis=1)
    loss_energy = -(2.0 * e_o) / (1.0 + e_o * e_i)
    return loss_discr + alpha * jnp.mean(loss_energy)


if __name__ == "__main__":
    key = jax.random.PRNGKey(0)

    # (N, C, T, alpha, tile_n): exercise T==1 fast path, T!=1 shared-max path,
    # padded final tile, and a multi-tile grid (parallel partial sums).
    cases = [
        (8, 16, 1.0, 0.1, None),
        (13, 24, 2.0, 0.5, None),
        (40, 16, 1.0, 0.1, 16),
    ]

    ok = True
    for idx, (N, C, T, alpha, tn) in enumerate(cases):
        key, k1, k2, k3 = jax.random.split(key, 4)
        logits = jax.random.normal(k1, (N, C), dtype=jnp.float32)
        logits_ft = jax.random.normal(k2, (N, C), dtype=jnp.float32)
        labels = jax.random.randint(k3, (N,), 0, C, dtype=jnp.int32)

        loss = harmonic_energy_loss(logits, labels, logits_ft,
                                    T=T, alpha=alpha, tile_n=tn)
        loss = jax.block_until_ready(loss)
        ref = _reference_loss(logits, labels, logits_ft, T, alpha)
        if not jnp.allclose(loss, ref, rtol=1e-5, atol=1e-5):
            ok = False
            print(f"case {idx}: mismatch kernel={loss} ref={ref}")

    assert ok
    print("KERNEL_OK")
</pallas_src>

<mosaic_0001>
module attributes {stable_mosaic.version = 11 : i64} {
  func.func @_harmonic_energy_partial_kernel(%arg0: i32, %arg1: memref<8x1xi32, #tpu.memory_space<vmem>>, %arg2: memref<8x16xf32, #tpu.memory_space<vmem>>, %arg3: memref<8x16xf32, #tpu.memory_space<vmem>>, %arg4: memref<8x128xf32, #tpu.memory_space<vmem>>) attributes {dimension_semantics = [#tpu.dimension_semantics<parallel>], iteration_bounds = array<i64: 1>, scalar_prefetch = 0 : i64, scratch_operands = 0 : i64, tpu.core_type = #tpu.core_type<tc>, window_params = [{transform_indices = @transform_0, window_bounds = array<i64: 8, 1>}, {transform_indices = @transform_1, window_bounds = array<i64: 8, 16>}, {transform_indices = @transform_2, window_bounds = array<i64: 8, 16>}, {transform_indices = @transform_3, window_bounds = array<i64: 8, 128>}]} {
    %c0 = arith.constant 0 : index
    %c0_0 = arith.constant 0 : index
    %0 = vector.load %arg2[%c0, %c0_0] : memref<8x16xf32, #tpu.memory_space<vmem>>, vector<8x16xf32>
    %c0_1 = arith.constant 0 : index
    %c0_2 = arith.constant 0 : index
    %1 = vector.load %arg3[%c0_1, %c0_2] : memref<8x16xf32, #tpu.memory_space<vmem>>, vector<8x16xf32>
    %c0_3 = arith.constant 0 : index
    %c0_4 = arith.constant 0 : index
    %2 = vector.load %arg1[%c0_3, %c0_4] : memref<8x1xi32, #tpu.memory_space<vmem>>, vector<8x1xi32>
    %c8_i32 = arith.constant 8 : i32
    %3 = arith.muli %arg0, %c8_i32 : i32
    %4 = tpu.iota {dimensions = array<i32: 0>} : vector<8x1xi32>
    %5 = vector.broadcast %3 : i32 to vector<8x1xi32>
    %6 = arith.addi %5, %4 : vector<8x1xi32>
    %c8_i32_5 = arith.constant 8 : i32
    %7 = vector.broadcast %c8_i32_5 : i32 to vector<8x1xi32>
    %8 = arith.cmpi slt, %6, %7 : vector<8x1xi32>
    %9 = arith.extui %8 : vector<8x1xi1> to vector<8x1xi32>
    %10 = arith.sitofp %9 : vector<8x1xi32> to vector<8x1xf32>
    %cst = arith.constant dense<0xFF800000> : vector<8xf32>
    %11 = vector.multi_reduction <maximumf>, %0, %cst [1] : vector<8x16xf32> to vector<8xf32>
    %12 = vector.shape_cast %11 : vector<8xf32> to vector<8x1xf32>
    %13 = vector.broadcast %12 : vector<8x1xf32> to vector<8x16xf32>
    %14 = arith.subf %0, %13 : vector<8x16xf32>
    %15 = math.exp %14 : vector<8x16xf32>
    %cst_6 = arith.constant dense<0.000000e+00> : vector<8xf32>
    %16 = vector.multi_reduction <add>, %15, %cst_6 [1] : vector<8x16xf32> to vector<8xf32>
    %17 = vector.shape_cast %16 : vector<8xf32> to vector<8x1xf32>
    %18 = math.log %17 : vector<8x1xf32>
    %19 = arith.addf %12, %18 : vector<8x1xf32>
    %cst_7 = arith.constant dense<0xFF800000> : vector<8xf32>
    %20 = vector.multi_reduction <maximumf>, %1, %cst_7 [1] : vector<8x16xf32> to vector<8xf32>
    %21 = vector.shape_cast %20 : vector<8xf32> to vector<8x1xf32>
    %cst_8 = arith.constant 0.000000e+00 : f32
    %22 = vector.broadcast %cst_8 : f32 to vector<8x1xf32>
    %23 = arith.subf %22, %19 : vector<8x1xf32>
    %24 = vector.broadcast %21 : vector<8x1xf32> to vector<8x16xf32>
    %25 = arith.subf %1, %24 : vector<8x16xf32>
    %26 = math.exp %25 : vector<8x16xf32>
    %cst_9 = arith.constant dense<0.000000e+00> : vector<8xf32>
    %27 = vector.multi_reduction <add>, %26, %cst_9 [1] : vector<8x16xf32> to vector<8xf32>
    %28 = vector.shape_cast %27 : vector<8xf32> to vector<8x1xf32>
    %29 = math.log %28 : vector<8x1xf32>
    %30 = arith.addf %21, %29 : vector<8x1xf32>
    %cst_10 = arith.constant 0.000000e+00 : f32
    %31 = vector.broadcast %cst_10 : f32 to vector<8x1xf32>
    %32 = arith.subf %31, %30 : vector<8x1xf32>
    %33 = tpu.iota {dimensions = array<i32: 1>} : vector<8x16xi32>
    %34 = vector.broadcast %2 : vector<8x1xi32> to vector<8x16xi32>
    %35 = arith.cmpi eq, %33, %34 : vector<8x16xi32>
    %36 = arith.extui %35 : vector<8x16xi1> to vector<8x16xi32>
    %37 = arith.sitofp %36 : vector<8x16xi32> to vector<8x16xf32>
    %38 = arith.mulf %0, %37 : vector<8x16xf32>
    %cst_11 = arith.constant dense<0.000000e+00> : vector<8xf32>
    %39 = vector.multi_reduction <add>, %38, %cst_11 [1] : vector<8x16xf32> to vector<8xf32>
    %40 = vector.shape_cast %39 : vector<8xf32> to vector<8x1xf32>
    %41 = arith.subf %19, %40 : vector<8x1xf32>
    %42 = arith.mulf %41, %10 : vector<8x1xf32>
    %43 = vector.shape_cast %42 : vector<8x1xf32> to vector<1x8x1xf32>
    %cst_12 = arith.constant dense<0.000000e+00> : vector<1xf32>
    %44 = vector.multi_reduction <add>, %43, %cst_12 [1, 2] : vector<1x8x1xf32> to vector<1xf32>
    %45 = vector.shape_cast %44 : vector<1xf32> to vector<1x1x1xf32>
    %46 = vector.extract %45[0, 0, 0] : f32 from vector<1x1x1xf32>
    %cst_13 = arith.constant 2.000000e+00 : f32
    %47 = vector.broadcast %cst_13 : f32 to vector<8x1xf32>
    %48 = arith.mulf %47, %32 : vector<8x1xf32>
    %cst_14 = arith.constant 0.000000e+00 : f32
    %49 = vector.broadcast %cst_14 : f32 to vector<8x1xf32>
    %50 = arith.subf %49, %48 : vector<8x1xf32>
    %51 = arith.mulf %32, %23 : vector<8x1xf32>
    %cst_15 = arith.constant 1.000000e+00 : f32
    %52 = vector.broadcast %cst_15 : f32 to vector<8x1xf32>
    %53 = arith.addf %52, %51 : vector<8x1xf32>
    %54 = arith.divf %50, %53 : vector<8x1xf32>
    %55 = arith.mulf %54, %10 : vector<8x1xf32>
    %56 = vector.shape_cast %55 : vector<8x1xf32> to vector<1x8x1xf32>
    %cst_16 = arith.constant dense<0.000000e+00> : vector<1xf32>
    %57 = vector.multi_reduction <add>, %56, %cst_16 [1, 2] : vector<1x8x1xf32> to vector<1xf32>
    %58 = vector.shape_cast %57 : vector<1xf32> to vector<1x1x1xf32>
    %59 = vector.extract %58[0, 0, 0] : f32 from vector<1x1x1xf32>
    %60 = tpu.iota {dimensions = array<i32: 0>} : vector<8x128xi32>
    %c0_i32 = arith.constant 0 : i32
    %61 = vector.broadcast %c0_i32 : i32 to vector<8x128xi32>
    %62 = arith.cmpi eq, %60, %61 : vector<8x128xi32>
    %c1_i32 = arith.constant 1 : i32
    %63 = vector.broadcast %c1_i32 : i32 to vector<8x128xi32>
    %64 = arith.cmpi eq, %60, %63 : vector<8x128xi32>
    %cst_17 = arith.constant 0.000000e+00 : f32
    %65 = vector.broadcast %59 : f32 to vector<8x128xf32>
    %66 = vector.broadcast %cst_17 : f32 to vector<8x128xf32>
    %67 = arith.select %64, %65, %66 : vector<8x128xi1>, vector<8x128xf32>
    %68 = vector.broadcast %46 : f32 to vector<8x128xf32>
    %69 = arith.select %62, %68, %67 : vector<8x128xi1>, vector<8x128xf32>
    %c0_18 = arith.constant 0 : index
    %c0_19 = arith.constant 0 : index
    %70 = vector.load %arg4[%c0_18, %c0_19] : memref<8x128xf32, #tpu.memory_space<vmem>>, vector<8x128xf32>
    tpu.vector_store %arg4[%c0_18, %c0_19], %69 {strides = array<i32>} : memref<8x128xf32, #tpu.memory_space<vmem>>, vector<8x128xf32>,
    return
  }
  func.func @transform_0(%arg0: i32) -> (i32, i32) {
    %c0_i32 = arith.constant 0 : i32
    %c0_i32_0 = arith.constant 0 : i32
    return %arg0, %c0_i32 : i32, i32
  }
  func.func @transform_1(%arg0: i32) -> (i32, i32) {
    %c0_i32 = arith.constant 0 : i32
    %c0_i32_0 = arith.constant 0 : i32
    return %arg0, %c0_i32 : i32, i32
  }
  func.func @transform_2(%arg0: i32) -> (i32, i32) {
    %c0_i32 = arith.constant 0 : i32
    %c0_i32_0 = arith.constant 0 : i32
    return %arg0, %c0_i32 : i32, i32
  }
  func.func @transform_3(%arg0: i32) -> (i32, i32) {
    %c0_i32 = arith.constant 0 : i32
    %c0_i32_0 = arith.constant 0 : i32
    return %arg0, %c0_i32 : i32, i32
  }
}

</mosaic_0001>

<llo_original>
// kernel: tpu_custom_call.1
$region0: #{tpu_custom_call.1}
  #allocation0 [shape = 'u32[]', space=smem, size = 0x4, offset = 0x4, fixed_abs, tag = 'smem constant byte address 0x4 - core index']
  #allocation1 [shape = 'u32[144,128]{1,0:T(1,128)}', space=vmem, size = 0x12000, scoped, tag = 'internal scratch']
  %s0 = inlined_call_operand.vmem [shape: s32[8,1], index: 0, kind: input, shape index: {}]
  %s1 = inlined_call_operand.vmem [shape: f32[8,16], index: 1, kind: input, shape index: {}]
  %s2 = inlined_call_operand.vmem [shape: f32[8,16], index: 2, kind: input, shape index: {}]
  %s3 = inlined_call_operand.hbm [shape: f32[8,128], index: 3, kind: output, shape index: {}]
  %s4 = sld [smem:[#allocation0]]
  $region22: #{tpu_custom_call.1} parent=0
    _
  %s6 = ssub.s32 1, %s4
  %s7 = scalar_select 0, %s6, %s4
  $region1: #{tpu_custom_call.1} parent=0
    #allocation2 [shape = 'u8[4096]{0}', space=vmem, size = 0x1000, scoped, tag = 'output window, operand 0, single buffered']
    #allocation3 [shape = 's32[1]{0}', space=sflag, size = 0x4, scoped, tag = 'scoped memory for tpu_custom_call.1']
    %8 = vsyncpa [#allocation3], 0
    // Predicated region
    $region2: #{tpu_custom_call.1} parent=1 // pred_check
      _
    $region3: #{tpu_custom_call.1} parent=1 // pred_check_branch
      %10 = sbr.rel (0) target = $region5
    $region4: #{tpu_custom_call.1} parent=1 // pred_region
      _
    $region5: #{tpu_custom_call.1} parent=1 // pred_fallthru
      _
    // Predicated region
    $region6: #{tpu_custom_call.1} parent=1 // pred_check
      _
    $region7: #{tpu_custom_call.1} parent=1 // pred_check_branch
      %12 = sbr.rel (0) target = $region9
    $region8: #{tpu_custom_call.1} parent=1 // pred_region
      _
    $region9: #{tpu_custom_call.1} parent=1 // pred_fallthru
      _
    // Predicated region
    $region10: #{tpu_custom_call.1} parent=1 // pred_check
      _
    $region11: #{tpu_custom_call.1} parent=1 // pred_check_branch
      %14 = sbr.rel (0) target = $region13
    $region12: #{tpu_custom_call.1} parent=1 // pred_region
      _
    $region13: #{tpu_custom_call.1} parent=1 // pred_fallthru
      _
    %v15 = vld [vmem:[%s1] sm:$0xff]
    %v16 = vld [vmem:[%s2] sm:$0xff]
    %v17 = vld [vmem:[%s0] sm:$0xff]
    %s18 = smul.u32 0, 8
    %v19 = vlaneseq
    %v20 = vshrl.u32 %v19, 7
    %v21 = vstv %s18
    %v22 = vadd.s32 %v21, %v20
    %vm23 = vcmp.lt.s32.totalorder %v22, 8
    %v24 = vsel %vm23, 1, 0
    %v25 = vcvt.s32.f32 %v24
    %vm26 = vcmask 130048
    %v27 = vsel %vm26, %v15, -inf
    %28 = vmax.xlane.f32.xlu0 %v27
    %v29 = vpop.xlane.xlu0 %28
    %v30 = vsub.f32 %v15, %v29
    %v31 = vmul.f32 %v30, 1.442695
    %v32 = vpow.pop %v31
    %v33 = vsel %vm26, %v32, 0.0
    %34 = vadd.xlane.f32.xlu0 %v33
    %v35 = vpop.xlane.xlu0 %34
    %v36 = vlog2.pop %v35
    %v37 = vmul.f32 %v36, 0.6931472
    %v38 = vadd.f32 %v29, %v37
    %v39 = vsel %vm26, %v16, -inf
    %40 = vmax.xlane.f32.xlu0 %v39
    %v41 = vpop.xlane.xlu0 %40
    %v42 = vsub.f32 0.0, %v38
    %v43 = vsub.f32 %v16, %v41
    %v44 = vmul.f32 %v43, 1.442695
    %v45 = vpow.pop %v44
    %v46 = vsel %vm26, %v45, 0.0
    %47 = vadd.xlane.f32.xlu0 %v46
    %v48 = vpop.xlane.xlu0 %47
    %v49 = vlog2.pop %v48
    %v50 = vmul.f32 %v49, 0.6931472
    %v51 = vadd.f32 %v41, %v50
    %v52 = vsub.f32 0.0, %v51
    %v53 = vlaneseq
    %v54 = vand.u32 %v53, 127
    %55 = vset.pattern.permute.xlu0 0
    %56 = vperm.xlu0 %55, %v17
    %v57 = vpop.permute.xlu0 %56
    %vm58 = vcmp.eq.s32.totalorder %v54, %v57
    %v59 = vsel %vm58, 1, 0
    %v60 = vcvt.s32.f32 %v59
    %v61 = vmul.f32 %v15, %v60
    %v62 = vsel %vm26, %v61, 0.0
    %63 = vadd.xlane.f32.xlu0 %v62
    %v64 = vpop.xlane.xlu0 %63
    %v65 = vsub.f32 %v38, %v64
    %v66 = vmul.f32 %v65, %v25
    %vm67 = vcmask 7168
    %v68 = vsel %vm67, %v66, 0.0
    %69 = vadd.xlane.f32.xlu0 %v68
    %v70 = vpop.xlane.xlu0 %69
    %v71 = vrot.slane %v70, 4
    %v72 = vadd.f32 %v70, %v71
    %v73 = vrot.slane %v72, 2
    %v74 = vadd.f32 %v72, %v73
    %v75 = vrot.slane %v74, 1
    %v76 = vadd.f32 %v74, %v75
    %s77 = vtos %v76
    %v78 = vmul.f32 %v52, 2.0
    %v79 = vsub.f32 0.0, %v78
    %v80 = vmul.f32 %v52, %v42
    %v81 = vadd.f32 %v80, 1.0
    %v82 = vrcp.pop %v81
    %v83 = vmul.f32 %v79, %v82
    %v84 = vmul.f32 %v83, %v25
    %v85 = vsel %vm67, %v84, 0.0
    %86 = vadd.xlane.f32.xlu0 %v85
    %v87 = vpop.xlane.xlu0 %86
    %v88 = vrot.slane %v87, 4
    %v89 = vadd.f32 %v87, %v88
    %v90 = vrot.slane %v89, 2
    %v91 = vadd.f32 %v89, %v90
    %v92 = vrot.slane %v91, 1
    %v93 = vadd.f32 %v91, %v92
    %s94 = vtos %v93
    %vm95 = vcmp.eq.s32.totalorder %v20, 0
    %vm96 = vcmp.eq.s32.totalorder %v20, 1
    %v97 = vstv %s94
    %v98 = vsel %vm96, %v97, 0.0
    %v99 = vstv %s77
    %v100 = vsel %vm95, %v99, %v98
    %101 = vst [vmem:[#allocation2] sm:$0xff] %v100
    // Predicated region
    $region14: #{tpu_custom_call.1} parent=1 // pred_check
      _
    $region15: #{tpu_custom_call.1} parent=1 // pred_check_branch
      %103 = sbr.rel (0) target = $region17
    $region16: #{tpu_custom_call.1} parent=1 // pred_region
      %s105 = ssub.s32 128, 128
      %106 = vsyncadd [#allocation3], %s105
      %s108 = sshll.u32 [#allocation2], 4
      %s109 = int_to_ptr.vmem [resolvable:$true] %s108
      %111 = dma.vmem_to_hbm [thread:$0]  %s109, 128, %s3, [#allocation3]
    $region17: #{tpu_custom_call.1} parent=1 // pred_fallthru
      _
    // Predicated region
    $region18: #{tpu_custom_call.1} parent=1 // pred_check
      _
    $region19: #{tpu_custom_call.1} parent=1 // pred_check_branch
      %113 = sbr.rel (0) target = $region21
    $region20: #{tpu_custom_call.1} parent=1 // pred_region
      %114 = dma.done [#allocation3], 128
    $region21: #{tpu_custom_call.1} parent=1 // pred_fallthru
      _
    %115 = vsyncpa [#allocation3], 1

</llo_original>
